<compile_context>
chip_gen: v7x
topology: tpu7x:2x2x1
jax: 0.10.0
libtpu: 0.0.40
codegen_flags: <defaults>
</compile_context>

<pallas_src>
import functools

import jax
import jax.numpy as jnp
from jax.experimental import pallas as pl
from jax.experimental.pallas import tpu as pltpu

EPS = 1e-6
_SUBLANE = 8
_MAX_ROW_TILE = 2048
_MIN_FUSED_ROW_TILE = 256      # below this the MXU M-dim is badly underfilled


def _round_up(x, m):
    return ((x + m - 1) // m) * m


def _tpu_topology():
    """Returns (scoped-VMEM limit to request, #TensorCores sharing 'parallel' grid axes)."""
    vmem_cap = 64 * 1024 * 1024          # safe floor (v7x per-core VMEM)
    try:
        vmem_cap = int(pltpu.get_tpu_info().vmem_capacity_bytes)
    except Exception:
        pass
    cores = 1
    try:
        dev = jax.devices()[0]
        nc = getattr(dev, "num_cores", None)
        if nc:
            cores = int(nc)
        else:
            kind = str(getattr(dev, "device_kind", "")).lower()
            if any(tag in kind for tag in ("v4", "v5p", "v7", "7x")):
                cores = 2
    except Exception:
        pass
    vmem_limit = (vmem_cap * 3) // 4     # 96 MiB on 128 MiB chips, 48 MiB on v7x
    return int(vmem_limit), int(cores)


def _pick_row_tile(n_rows, d, in_itemsize, out_itemsize, n_in_streams,
                   resident_bytes, vmem_limit, cores):
    """Largest row tile whose double-buffered streams + f32 working set fit
    the VMEM budget; on multi-TensorCore chips, capped so the 1-D grid keeps
    enough steps for pipelining / core sharding."""
    per_row = (2 * n_in_streams * d * in_itemsize   # double-buffered input streams
               + 2 * d * out_itemsize               # double-buffered output stream
               + 2 * d * 4)                         # f32 working set inside kernel
    budget = vmem_limit - 2 * resident_bytes - (8 << 20)   # constants double-buffered + headroom
    budget = max(budget, per_row * _SUBLANE)
    rt = min(budget // per_row, _MAX_ROW_TILE)
    rt = max(_SUBLANE, (rt // _SUBLANE) * _SUBLANE)
    rt = min(rt, _round_up(n_rows, _SUBLANE))
    if cores > 1 and n_rows > cores * _SUBLANE:
        # ~4 grid steps per TensorCore when that still keeps tiles >= 256 rows;
        # otherwise at least one step per core so every core gets work.
        per_step = _round_up(-(-n_rows // (4 * cores)), _SUBLANE)
        if per_step < _MIN_FUSED_ROW_TILE:
            per_step = _round_up(-(-n_rows // cores), _SUBLANE)
        rt = min(rt, max(per_step, _SUBLANE))
    return int(max(rt, _SUBLANE))


def _layer_norm_f32(y, d, gamma_f32, beta_f32):
    """Custom STL2G LayerNorm on an f32 tile: unbiased std (N-1), eps added to std."""
    mean = jnp.sum(y, axis=-1, keepdims=True) * (1.0 / d)
    diff = y - mean
    var_unbiased = jnp.sum(diff * diff, axis=-1, keepdims=True) * (1.0 / (d - 1))
    # divide -> EUP reciprocal (exact) + VPU multiply; VALU stays free.
    inv = pl.reciprocal(jnp.sqrt(var_unbiased) + EPS, approx=False)
    return (diff * inv) * gamma_f32 + beta_f32


def _residual_ln_kernel(x_ref, s_ref, g_ref, b_ref, o_ref, *, d):
    # General path: sublayer output s is precomputed (plain-JAX glue).
    y = x_ref[...].astype(jnp.float32) + s_ref[...].astype(jnp.float32)
    out = _layer_norm_f32(y, d, g_ref[...], b_ref[...])
    # dropout(p=0.1) is identity at inference time.
    # TODO(synk): training-mode stochastic dropout (pltpu.prng_*) not emitted.
    o_ref[...] = out.astype(o_ref.dtype)


def _fused_linear_kernel(x_ref, w_ref, bias_ref, g_ref, b_ref, o_ref, *, d, mxu_dtype):
    # Fused path: sublayer(x) = x @ W + bias computed on the MXU in-kernel.
    xf = x_ref[...].astype(jnp.float32)
    if mxu_dtype is not None:
        s = jnp.dot(x_ref[...].astype(mxu_dtype), w_ref[...].astype(mxu_dtype),
                    preferred_element_type=jnp.float32)
    else:
        s = jnp.dot(x_ref[...], w_ref[...], preferred_element_type=jnp.float32)
    y = xf + s + bias_ref[...]
    out = _layer_norm_f32(y, d, g_ref[...], b_ref[...])
    # dropout(p=0.1) is identity at inference time.
    # TODO(synk): training-mode stochastic dropout (pltpu.prng_*) not emitted.
    o_ref[...] = out.astype(o_ref.dtype)


def sublayer_connection(x, sublayer_fn, gamma, beta, *, row_tile=None):
    """x: (B, S, D). Returns dropout(layer_norm(x + sublayer_fn(x))) (eval mode)."""
    B, S, D = x.shape
    assert D > 1, "unbiased std needs D > 1"
    s = sublayer_fn(x)                       # arbitrary sublayer: plain-JAX glue
    R = B * S
    vmem_limit, cores = _tpu_topology()
    itemsize = jnp.dtype(x.dtype).itemsize
    rt = row_tile or _pick_row_tile(R, D, itemsize, itemsize,
                                    n_in_streams=2, resident_bytes=2 * D * 4,
                                    vmem_limit=vmem_limit, cores=cores)

    xr = x.reshape(R, D)                      # contiguity-preserving (free)
    sr = s.reshape(R, D).astype(x.dtype)
    gp = gamma.reshape(1, D).astype(jnp.float32)
    bp = beta.reshape(1, D).astype(jnp.float32)

    kernel = functools.partial(_residual_ln_kernel, d=D)
    out = pl.pallas_call(
        kernel,
        out_shape=jax.ShapeDtypeStruct((R, D), x.dtype),
        grid_spec=pltpu.PrefetchScalarGridSpec(
            num_scalar_prefetch=0,
            grid=(pl.cdiv(R, rt),),           # ragged last tile; OOB rows clipped on write
            in_specs=[
                pl.BlockSpec((rt, D), lambda i: (i, 0)),   # x tile (streamed)
                pl.BlockSpec((rt, D), lambda i: (i, 0)),   # sublayer(x) tile
                pl.BlockSpec((1, D), lambda i: (0, 0)),    # gamma (f32, resident)
                pl.BlockSpec((1, D), lambda i: (0, 0)),    # beta  (f32, resident)
            ],
            out_specs=pl.BlockSpec((rt, D), lambda i: (i, 0)),
        ),
        compiler_params=pltpu.CompilerParams(
            dimension_semantics=("parallel",),
            vmem_limit_bytes=vmem_limit,
        ),
    )(xr, sr, gp, bp)
    return out.reshape(B, S, D)


def sublayer_connection_fused_linear(x, W, bvec, gamma, beta, *,
                                     row_tile=None, mxu_dtype=None):
    """Fused variant when the sublayer is a linear layer: x @ W + bvec.
    x: (B, S, D), W: (D, D), bvec/gamma/beta: (D,).
    mxu_dtype: optional dtype (e.g. jnp.bfloat16) for the matmul operands only;
    residual, bias add and LayerNorm stay in f32."""
    B, S, D = x.shape
    assert D > 1, "unbiased std needs D > 1"
    R = B * S
    vmem_limit, cores = _tpu_topology()
    itemsize = jnp.dtype(x.dtype).itemsize
    # W stays resident via constant index_map; the default pipeline still
    # double-buffers it, so 2*|W| counts against VMEM.
    resident = D * D * jnp.dtype(W.dtype).itemsize + 3 * D * 4
    rt = row_tile or _pick_row_tile(R, D, itemsize, itemsize,
                                    n_in_streams=1, resident_bytes=resident,
                                    vmem_limit=vmem_limit, cores=cores)

    if row_tile is None and rt < min(_MIN_FUSED_ROW_TILE, _round_up(R, _SUBLANE)):
        # Resident W is too large to keep MXU-dense row tiles: fall back to the
        # general (unfused) residual+LayerNorm kernel.
        # TODO(synk): K-tiled fused matmul (accumulator scratch) for very large D.
        return sublayer_connection(
            x, lambda t: jnp.dot(t, W.astype(t.dtype)) + bvec.astype(t.dtype),
            gamma, beta)

    xr = x.reshape(R, D)
    biasp = bvec.reshape(1, D).astype(jnp.float32)
    gp = gamma.reshape(1, D).astype(jnp.float32)
    bp = beta.reshape(1, D).astype(jnp.float32)

    kernel = functools.partial(_fused_linear_kernel, d=D, mxu_dtype=mxu_dtype)
    out = pl.pallas_call(
        kernel,
        out_shape=jax.ShapeDtypeStruct((R, D), x.dtype),
        grid_spec=pltpu.PrefetchScalarGridSpec(
            num_scalar_prefetch=0,
            grid=(pl.cdiv(R, rt),),
            in_specs=[
                pl.BlockSpec((rt, D), lambda i: (i, 0)),   # x tile (streamed)
                pl.BlockSpec((D, D), lambda i: (0, 0)),    # W (VMEM-resident)
                pl.BlockSpec((1, D), lambda i: (0, 0)),    # bias  (f32)
                pl.BlockSpec((1, D), lambda i: (0, 0)),    # gamma (f32)
                pl.BlockSpec((1, D), lambda i: (0, 0)),    # beta  (f32)
            ],
            out_specs=pl.BlockSpec((rt, D), lambda i: (i, 0)),
        ),
        compiler_params=pltpu.CompilerParams(
            dimension_semantics=("parallel",),
            vmem_limit_bytes=vmem_limit,
        ),
    )(xr, W, biasp, gp, bp)
    return out.reshape(B, S, D)


def _reference(x, s, gamma, beta):
    y = x.astype(jnp.float32) + s.astype(jnp.float32)
    mean = jnp.mean(y, axis=-1, keepdims=True)
    std = jnp.sqrt(jnp.sum((y - mean) ** 2, axis=-1, keepdims=True) / (y.shape[-1] - 1))
    return (gamma.astype(jnp.float32) * (y - mean) / (std + EPS)
            + beta.astype(jnp.float32))


if __name__ == "__main__":
    B, S, D = 2, 8, 32

    key = jax.random.PRNGKey(0)
    kx, kw, kb = jax.random.split(key, 3)
    x = jax.random.normal(kx, (B, S, D), dtype=jnp.float32)

    # LayerNorm params, deterministic init (as in module __init__).
    gamma = jnp.ones((D,), dtype=jnp.float32)   # a_2
    beta = jnp.zeros((D,), dtype=jnp.float32)   # b_2

    # Synthetic sublayer: a deterministic linear layer.
    W = jax.random.normal(kw, (D, D), dtype=jnp.float32) * 0.02
    bvec = jax.random.normal(kb, (D,), dtype=jnp.float32) * 0.02
    sublayer_fn = lambda t: jnp.einsum("bsd,de->bse", t, W) + bvec

    ref = _reference(x, sublayer_fn(x), gamma, beta)

    # 1) General (arbitrary-sublayer) path.
    out1 = jax.block_until_ready(sublayer_connection(x, sublayer_fn, gamma, beta))
    err1 = float(jnp.max(jnp.abs(out1 - ref)))
    assert jnp.allclose(out1, ref, atol=1e-5, rtol=1e-5), err1

    # 2) Fused linear path (f32). Slightly looser tolerance: the in-kernel MXU
    #    f32 matmul may use a different decomposition than the XLA einsum.
    out2 = jax.block_until_ready(
        sublayer_connection_fused_linear(x, W, bvec, gamma, beta))
    err2 = float(jnp.max(jnp.abs(out2 - ref)))
    assert jnp.allclose(out2, ref, atol=2e-3, rtol=2e-3), err2

    # 3) Fused linear path, f32 I/O but bf16 MXU operands (review item); the
    #    residual / bias / LayerNorm stay in f32.
    out2b = jax.block_until_ready(
        sublayer_connection_fused_linear(x, W, bvec, gamma, beta,
                                         mxu_dtype=jnp.bfloat16))
    err2b = float(jnp.max(jnp.abs(out2b - ref)))
    assert jnp.allclose(out2b, ref, atol=2e-2, rtol=2e-2), err2b

    # 4) Fused linear path with bf16 I/O (halves HBM traffic; stats in f32).
    xb = x.astype(jnp.bfloat16)
    Wb = W.astype(jnp.bfloat16)
    bb = bvec.astype(jnp.bfloat16)
    out3 = jax.block_until_ready(
        sublayer_connection_fused_linear(xb, Wb, bb, gamma, beta))
    assert out3.dtype == jnp.bfloat16
    s_b = (jnp.einsum("bsd,de->bse", xb.astype(jnp.float32), Wb.astype(jnp.float32))
           + bb.astype(jnp.float32))
    ref_b = _reference(xb, s_b, gamma, beta)
    err3 = float(jnp.max(jnp.abs(out3.astype(jnp.float32) - ref_b)))
    assert jnp.allclose(out3.astype(jnp.float32), ref_b, atol=1e-1), err3

    print("KERNEL_OK")
</pallas_src>

<mosaic_0001>
module attributes {stable_mosaic.version = 11 : i64} {
  func.func @_residual_ln_kernel(%arg0: i32, %arg1: memref<16x32xf32, #tpu.memory_space<vmem>>, %arg2: memref<16x32xf32, #tpu.memory_space<vmem>>, %arg3: memref<1x32xf32, #tpu.memory_space<vmem>>, %arg4: memref<1x32xf32, #tpu.memory_space<vmem>>, %arg5: memref<16x32xf32, #tpu.memory_space<vmem>>) attributes {dimension_semantics = [#tpu.dimension_semantics<parallel>], iteration_bounds = array<i64: 1>, scalar_prefetch = 0 : i64, scratch_operands = 0 : i64, tpu.core_type = #tpu.core_type<tc>, window_params = [{transform_indices = @transform_0, window_bounds = array<i64: 16, 32>}, {transform_indices = @transform_1, window_bounds = array<i64: 16, 32>}, {pipeline_mode = #tpu.pipeline_mode<synchronous>, transform_indices = @transform_2, window_bounds = array<i64: 1, 32>}, {pipeline_mode = #tpu.pipeline_mode<synchronous>, transform_indices = @transform_3, window_bounds = array<i64: 1, 32>}, {transform_indices = @transform_4, window_bounds = array<i64: 16, 32>}]} {
    %c0 = arith.constant 0 : index
    %c0_0 = arith.constant 0 : index
    %0 = vector.load %arg1[%c0, %c0_0] : memref<16x32xf32, #tpu.memory_space<vmem>>, vector<16x32xf32>
    %c0_1 = arith.constant 0 : index
    %c0_2 = arith.constant 0 : index
    %1 = vector.load %arg2[%c0_1, %c0_2] : memref<16x32xf32, #tpu.memory_space<vmem>>, vector<16x32xf32>
    %2 = arith.addf %0, %1 : vector<16x32xf32>
    %c0_3 = arith.constant 0 : index
    %c0_4 = arith.constant 0 : index
    %3 = vector.load %arg3[%c0_3, %c0_4] : memref<1x32xf32, #tpu.memory_space<vmem>>, vector<1x32xf32>
    %c0_5 = arith.constant 0 : index
    %c0_6 = arith.constant 0 : index
    %4 = vector.load %arg4[%c0_5, %c0_6] : memref<1x32xf32, #tpu.memory_space<vmem>>, vector<1x32xf32>
    %cst = arith.constant dense<0.000000e+00> : vector<16xf32>
    %5 = vector.multi_reduction <add>, %2, %cst [1] : vector<16x32xf32> to vector<16xf32>
    %6 = vector.shape_cast %5 : vector<16xf32> to vector<16x1xf32>
    %cst_7 = arith.constant 3.125000e-02 : f32
    %7 = vector.broadcast %cst_7 : f32 to vector<16x1xf32>
    %8 = arith.mulf %6, %7 : vector<16x1xf32>
    %9 = vector.broadcast %8 : vector<16x1xf32> to vector<16x32xf32>
    %10 = arith.subf %2, %9 : vector<16x32xf32>
    %11 = arith.mulf %10, %10 : vector<16x32xf32>
    %cst_8 = arith.constant dense<0.000000e+00> : vector<16xf32>
    %12 = vector.multi_reduction <add>, %11, %cst_8 [1] : vector<16x32xf32> to vector<16xf32>
    %13 = vector.shape_cast %12 : vector<16xf32> to vector<16x1xf32>
    %cst_9 = arith.constant 0.0322580636 : f32
    %14 = vector.broadcast %cst_9 : f32 to vector<16x1xf32>
    %15 = arith.mulf %13, %14 : vector<16x1xf32>
    %16 = math.sqrt %15 : vector<16x1xf32>
    %cst_10 = arith.constant 9.99999997E-7 : f32
    %17 = vector.broadcast %cst_10 : f32 to vector<16x1xf32>
    %18 = arith.addf %16, %17 : vector<16x1xf32>
    %19 = tpu.reciprocal %18 : vector<16x1xf32> -> vector<16x1xf32>
    %20 = vector.broadcast %19 : vector<16x1xf32> to vector<16x32xf32>
    %21 = arith.mulf %10, %20 : vector<16x32xf32>
    %22 = vector.broadcast %3 : vector<1x32xf32> to vector<16x32xf32>
    %23 = arith.mulf %21, %22 : vector<16x32xf32>
    %24 = vector.broadcast %4 : vector<1x32xf32> to vector<16x32xf32>
    %25 = arith.addf %23, %24 : vector<16x32xf32>
    %c0_11 = arith.constant 0 : index
    %c0_12 = arith.constant 0 : index
    %26 = vector.load %arg5[%c0_11, %c0_12] : memref<16x32xf32, #tpu.memory_space<vmem>>, vector<16x32xf32>
    tpu.vector_store %arg5[%c0_11, %c0_12], %25 {strides = array<i32>} : memref<16x32xf32, #tpu.memory_space<vmem>>, vector<16x32xf32>,
    return
  }
  func.func @transform_0(%arg0: i32) -> (i32, i32) {
    %c0_i32 = arith.constant 0 : i32
    %c0_i32_0 = arith.constant 0 : i32
    return %arg0, %c0_i32 : i32, i32
  }
  func.func @transform_1(%arg0: i32) -> (i32, i32) {
    %c0_i32 = arith.constant 0 : i32
    %c0_i32_0 = arith.constant 0 : i32
    return %arg0, %c0_i32 : i32, i32
  }
  func.func @transform_2(%arg0: i32) -> (i32, i32) {
    %c0_i32 = arith.constant 0 : i32
    %c0_i32_0 = arith.constant 0 : i32
    %c0_i32_1 = arith.constant 0 : i32
    return %c0_i32, %c0_i32_0 : i32, i32
  }
  func.func @transform_3(%arg0: i32) -> (i32, i32) {
    %c0_i32 = arith.constant 0 : i32
    %c0_i32_0 = arith.constant 0 : i32
    %c0_i32_1 = arith.constant 0 : i32
    return %c0_i32, %c0_i32_0 : i32, i32
  }
  func.func @transform_4(%arg0: i32) -> (i32, i32) {
    %c0_i32 = arith.constant 0 : i32
    %c0_i32_0 = arith.constant 0 : i32
    return %arg0, %c0_i32 : i32, i32
  }
}

</mosaic_0001>

<llo_original>
// kernel: tpu_custom_call.1
$region0: #{tpu_custom_call.1}
  #allocation0 [shape = 'u32[]', space=smem, size = 0x4, offset = 0x4, fixed_abs, tag = 'smem constant byte address 0x4 - core index']
  #allocation1 [shape = 'u32[144,128]{1,0:T(1,128)}', space=vmem, size = 0x12000, scoped, tag = 'internal scratch']
  %s0 = inlined_call_operand.hbm [shape: f32[16,32], index: 0, kind: input, shape index: {}]
  %s1 = inlined_call_operand.hbm [shape: f32[16,32], index: 1, kind: input, shape index: {}]
  %s2 = inlined_call_operand.vmem [shape: f32[1,32], index: 2, kind: input, shape index: {}]
  %s3 = inlined_call_operand.vmem [shape: f32[1,32], index: 3, kind: input, shape index: {}]
  %s4 = inlined_call_operand.hbm [shape: f32[16,32], index: 4, kind: output, shape index: {}]
  %s5 = sld [smem:[#allocation0]]
  $region34: #{tpu_custom_call.1} parent=0
    _
  %s7 = ssub.s32 1, %s5
  %s8 = scalar_select 0, %s7, %s5
  $region1: #{tpu_custom_call.1} parent=0
    #allocation2 [shape = 'u8[8192]{0}', space=vmem, size = 0x2000, scoped, tag = 'input window, operand 0, single buffered']
    #allocation3 [shape = 's32[1]{0}', space=sflag, size = 0x4, scoped, tag = 'scoped memory for tpu_custom_call.1']
    #allocation4 [shape = 's32[1]{0}', space=sflag, size = 0x4, scoped, tag = 'scoped memory for tpu_custom_call.1']
    #allocation5 [shape = 'u8[8192]{0}', space=vmem, size = 0x2000, scoped, tag = 'input window, operand 1, single buffered']
    #allocation6 [shape = 's32[1]{0}', space=sflag, size = 0x4, scoped, tag = 'scoped memory for tpu_custom_call.1']
    #allocation7 [shape = 'u8[8192]{0}', space=vmem, size = 0x2000, scoped, tag = 'output window, operand 0, single buffered']
    %9 = vsyncpa [#allocation3], 0
    %10 = vsyncpa [#allocation6], 0
    %11 = vsyncpa [#allocation4], 0
    // Predicated region
    $region2: #{tpu_custom_call.1} parent=1 // pred_check
      _
    $region3: #{tpu_custom_call.1} parent=1 // pred_check_branch
      %13 = sbr.rel (0) target = $region5
    $region4: #{tpu_custom_call.1} parent=1 // pred_region
      %s15 = ssub.s32 256, 256
      %16 = vsyncadd [#allocation3], %s15
      %s17 = sshll.u32 [#allocation2], 4
      %s18 = int_to_ptr.vmem [resolvable:$true] %s17
      %23 = dma.hbm_to_vmem [thread:$0]  %s0, 256, %s18, [#allocation3], 128, 128, 8
    $region5: #{tpu_custom_call.1} parent=1 // pred_fallthru
      _
    // Predicated region
    $region6: #{tpu_custom_call.1} parent=1 // pred_check
      _
    $region7: #{tpu_custom_call.1} parent=1 // pred_check_branch
      %25 = sbr.rel (0) target = $region9
    $region8: #{tpu_custom_call.1} parent=1 // pred_region
      %s27 = ssub.s32 256, 256
      %28 = vsyncadd [#allocation6], %s27
      %s29 = sshll.u32 [#allocation5], 4
      %s30 = int_to_ptr.vmem [resolvable:$true] %s29
      %35 = dma.hbm_to_vmem [thread:$0]  %s1, 256, %s30, [#allocation6], 128, 128, 8
    $region9: #{tpu_custom_call.1} parent=1 // pred_fallthru
      _
    // Predicated region
    $region10: #{tpu_custom_call.1} parent=1 // pred_check
      _
    $region11: #{tpu_custom_call.1} parent=1 // pred_check_branch
      %37 = sbr.rel (0) target = $region13
    $region12: #{tpu_custom_call.1} parent=1 // pred_region
      _
    $region13: #{tpu_custom_call.1} parent=1 // pred_fallthru
      _
    // Predicated region
    $region14: #{tpu_custom_call.1} parent=1 // pred_check
      _
    $region15: #{tpu_custom_call.1} parent=1 // pred_check_branch
      %39 = sbr.rel (0) target = $region17
    $region16: #{tpu_custom_call.1} parent=1 // pred_region
      _
    $region17: #{tpu_custom_call.1} parent=1 // pred_fallthru
      _
    // Predicated region
    $region18: #{tpu_custom_call.1} parent=1 // pred_check
      _
    $region19: #{tpu_custom_call.1} parent=1 // pred_check_branch
      %41 = sbr.rel (0) target = $region21
    $region20: #{tpu_custom_call.1} parent=1 // pred_region
      %42 = dma.done [#allocation3], 256
    $region21: #{tpu_custom_call.1} parent=1 // pred_fallthru
      _
    // Predicated region
    $region22: #{tpu_custom_call.1} parent=1 // pred_check
      _
    $region23: #{tpu_custom_call.1} parent=1 // pred_check_branch
      %44 = sbr.rel (0) target = $region25
    $region24: #{tpu_custom_call.1} parent=1 // pred_region
      %45 = dma.done [#allocation6], 256
    $region25: #{tpu_custom_call.1} parent=1 // pred_fallthru
      _
    %v46 = vld [vmem:[#allocation2] sm:$0xff]
    %v47 = vld [vmem:[#allocation2 + $0x8] sm:$0xff]
    %v48 = vld [vmem:[#allocation5] sm:$0xff]
    %v49 = vld [vmem:[#allocation5 + $0x8] sm:$0xff]
    %v50 = vadd.f32 %v46, %v48
    %v51 = vadd.f32 %v47, %v49
    %v52 = vld [vmem:[%s2] sm:$0x1]
    %v53 = vld [vmem:[%s3] sm:$0x1]
    %vm54 = vcmask 261120
    %v55 = vsel %vm54, %v50, 0.0
    %56 = vadd.xlane.f32.xlu0 %v55
    %v57 = vpop.xlane.xlu0 %56
    %v58 = vsel %vm54, %v51, 0.0
    %59 = vadd.xlane.f32.xlu0 %v58
    %v60 = vpop.xlane.xlu0 %59
    %v61 = vmul.f32 %v57, 0.03125
    %v62 = vmul.f32 %v60, 0.03125
    %v63 = vsub.f32 %v50, %v61
    %v64 = vsub.f32 %v51, %v62
    %v65 = vmul.f32 %v63, %v63
    %v66 = vmul.f32 %v64, %v64
    %v67 = vsel %vm54, %v65, 0.0
    %68 = vadd.xlane.f32.xlu0 %v67
    %v69 = vpop.xlane.xlu0 %68
    %v70 = vsel %vm54, %v66, 0.0
    %71 = vadd.xlane.f32.xlu0 %v70
    %v72 = vpop.xlane.xlu0 %71
    %v73 = vmul.f32 %v69, 0.032258064
    %v74 = vmul.f32 %v72, 0.032258064
    %v75 = vrsqrt.pop %v73
    %v76 = vmul.f32 %v73, %v75
    %vm77 = vcmp.eq.f32.partialorder %v73, inf
    %v78 = vsel %vm77, %v73, %v76
    %vm79 = vcmp.eq.f32.partialorder %v73, 0.0
    %v80 = vand.u32 %v73, 2147483648
    %v81 = vsel %vm79, %v80, %v78
    %v82 = vrsqrt.pop %v74
    %v83 = vmul.f32 %v74, %v82
    %vm84 = vcmp.eq.f32.partialorder %v74, inf
    %v85 = vsel %vm84, %v74, %v83
    %vm86 = vcmp.eq.f32.partialorder %v74, 0.0
    %v87 = vand.u32 %v74, 2147483648
    %v88 = vsel %vm86, %v87, %v85
    %v89 = vadd.f32 %v81, 1e-06
    %v90 = vadd.f32 %v88, 1e-06
    %v91 = vrcp.pop %v89
    %v92 = vrcp.pop %v90
    %v93 = vmul.f32 %v63, %v91
    %v94 = vmul.f32 %v64, %v92
    %v96 = vlaneseq
    %v97 = vshrl.u32 %v96, 7
    %v98 = vsub.s32 0, %v97
    %v99 = vrot.slane %v52, %v98
    %v101 = vmul.f32 %v93, %v99
    %v102 = vmul.f32 %v94, %v99
    %v104 = vlaneseq
    %v105 = vshrl.u32 %v104, 7
    %v106 = vsub.s32 0, %v105
    %v107 = vrot.slane %v53, %v106
    %v109 = vadd.f32 %v101, %v107
    %v110 = vadd.f32 %v102, %v107
    %111 = vst.msk [vmem:[#allocation7] sm:$0xff] %vm54, %v109
    %112 = vst.msk [vmem:[#allocation7 + $0x8] sm:$0xff] %vm54, %v110
    // Predicated region
    $region26: #{tpu_custom_call.1} parent=1 // pred_check
      _
    $region27: #{tpu_custom_call.1} parent=1 // pred_check_branch
      %114 = sbr.rel (0) target = $region29
    $region28: #{tpu_custom_call.1} parent=1 // pred_region
      %s116 = ssub.s32 256, 256
      %117 = vsyncadd [#allocation4], %s116
      %s118 = sshll.u32 [#allocation7], 4
      %s119 = int_to_ptr.vmem [resolvable:$true] %s118
      %124 = dma.vmem_to_hbm [thread:$0]  %s119, 256, %s4, [#allocation4], 128, 128, 8
    $region29: #{tpu_custom_call.1} parent=1 // pred_fallthru
      _
    // Predicated region
    $region30: #{tpu_custom_call.1} parent=1 // pred_check
      _
    $region31: #{tpu_custom_call.1} parent=1 // pred_check_branch
      %126 = sbr.rel (0) target = $region33
    $region32: #{tpu_custom_call.1} parent=1 // pred_region
      %127 = dma.done [#allocation4], 256
    $region33: #{tpu_custom_call.1} parent=1 // pred_fallthru
      _
    %128 = vsyncpa [#allocation3], 1
    %129 = vsyncpa [#allocation6], 1
    %130 = vsyncpa [#allocation4], 1

</llo_original>
